<compile_context>
chip_gen: v7x
topology: tpu7x:2x2x1
jax: 0.10.0
libtpu: 0.0.40
codegen_flags: <defaults>
</compile_context>

<pallas_src>
import jax
import jax.numpy as jnp
from jax import lax
from jax.experimental import pallas as pl
from jax.experimental.pallas import tpu as pltpu


# ------------------------------ SparseMatrix ------------------------------- #
class SparseMatrix:
    """Minimal stand-in for the project's SparseMatrix container."""

    def __init__(self, indices, values, shape, indices_diag=None, is_set=False):
        self.indices = indices            # [2, nnz] int32 (row, col)
        self.values = values              # [nnz, channels]
        self.shape = shape                # (n, m, channels)
        self.n = shape[0]
        self.m = shape[1]
        self.indices_diag = indices_diag
        self.is_set = is_set


# --------------------------------- helpers --------------------------------- #
def _round_up(x, m):
    return (x + m - 1) // m * m


def _sublane(dtype):
    # dtype-aware sublane alignment: f32 -> 8, bf16 -> 16, int8/fp8 -> 32.
    return {2: 16, 1: 32}.get(jnp.dtype(dtype).itemsize, 8)


def _pick_tm(nnz, tm, sub):
    """Sublane-aligned nnz tile; >=2 tiles when possible so both v7x TCs work."""
    if nnz <= sub:
        return nnz                              # single tiny full-extent tile
    tm = max(sub, (tm // sub) * sub)
    if nnz <= tm:
        return _round_up(pl.cdiv(nnz, 2), sub)  # split nnz -> 2 parallel steps
    return tm


# ------------------------------ Pallas kernels ----------------------------- #
def _matmul_bias_kernel(x_ref, w_ref, b_ref, o_ref):
    """o = x @ w.T + b for one tile; single K step, no accumulator/scratch."""
    acc = lax.dot_general(
        x_ref[...], w_ref[...],
        dimension_numbers=(((1,), (1,)), ((), ())),
        preferred_element_type=jnp.float32)
    o_ref[...] = (acc + b_ref[...].astype(jnp.float32)).astype(o_ref.dtype)


def _matmul_bias_acc_out_kernel(x_ref, w_ref, b_ref, o_ref):
    """f32 output resident across the K grid axis; accumulate into o_ref."""
    k = pl.program_id(2)

    @pl.when(k == 0)
    def _():
        o_ref[...] = jnp.zeros_like(o_ref)

    o_ref[...] += lax.dot_general(
        x_ref[...], w_ref[...],
        dimension_numbers=(((1,), (1,)), ((), ())),
        preferred_element_type=jnp.float32)

    @pl.when(k == pl.num_programs(2) - 1)
    def _():
        o_ref[...] += b_ref[...].astype(o_ref.dtype)


def _matmul_bias_scratch_kernel(x_ref, w_ref, b_ref, o_ref, acc_ref):
    """Narrow output dtype: accumulate in a f32 VMEM scratch, cast once."""
    k = pl.program_id(2)

    @pl.when(k == 0)
    def _():
        acc_ref[...] = jnp.zeros_like(acc_ref)

    acc_ref[...] += lax.dot_general(
        x_ref[...], w_ref[...],
        dimension_numbers=(((1,), (1,)), ((), ())),
        preferred_element_type=jnp.float32)

    @pl.when(k == pl.num_programs(2) - 1)
    def _():
        o_ref[...] = (acc_ref[...] + b_ref[...].astype(jnp.float32)).astype(o_ref.dtype)


# -------------------------------- wrappers ---------------------------------- #
def _linear_values_resident(values, weight, bias2d, *, tm):
    """Whole weight VMEM-resident; grid only over the nnz axis; no accumulator."""
    nnz, cin = values.shape
    cout = weight.shape[0]
    out_dtype = values.dtype
    x_item = jnp.dtype(values.dtype).itemsize
    w_item = jnp.dtype(weight.dtype).itemsize
    b_item = jnp.dtype(bias2d.dtype).itemsize
    o_item = jnp.dtype(out_dtype).itemsize
    sub = _sublane(values.dtype)

    # Cap tm so double-buffered x/out tiles + resident W stay well inside
    # v7x's 64 MiB physical VMEM.
    per_row = 2 * (cin * x_item + cout * o_item)
    max_tm = max(sub, (24 * 1024 * 1024 // max(per_row, 1)) // sub * sub)
    tm = _pick_tm(nnz, min(tm, max_tm), sub)
    grid = (pl.cdiv(nnz, tm),)

    vmem_need = per_row * tm + cin * cout * w_item + cout * b_item
    vmem_limit = int(min(max(2 * vmem_need, 16 << 20), 48 << 20))

    return pl.pallas_call(
        _matmul_bias_kernel,
        out_shape=jax.ShapeDtypeStruct((nnz, cout), out_dtype),
        grid=grid,
        in_specs=[
            # values tile: K is a full-extent block -> no K padding even if cin < 128.
            pl.BlockSpec((tm, cin), lambda i: (i, 0)),
            # whole weight, constant index map -> read from HBM once, VMEM-resident.
            pl.BlockSpec((cout, cin), lambda i: (0, 0)),
            pl.BlockSpec((1, cout), lambda i: (0, 0)),
        ],
        out_specs=pl.BlockSpec((tm, cout), lambda i: (i, 0)),
        compiler_params=pltpu.CompilerParams(
            dimension_semantics=("parallel",),
            vmem_limit_bytes=vmem_limit,
        ),
        cost_estimate=pl.CostEstimate(
            flops=2 * nnz * cin * cout,
            transcendentals=0,
            bytes_accessed=(nnz * cin * x_item + cin * cout * w_item
                            + cout * b_item + nnz * cout * o_item),
        ),
    )(values, weight, bias2d)


def _linear_values_tiled(values, weight, bias2d, *, tm, tn, tk):
    """Fallback for weights too large to keep VMEM-resident."""
    nnz, cin = values.shape
    cout = weight.shape[0]
    out_dtype = values.dtype
    x_item = jnp.dtype(values.dtype).itemsize
    w_item = jnp.dtype(weight.dtype).itemsize
    o_item = jnp.dtype(out_dtype).itemsize
    sub = _sublane(values.dtype)

    tm = _pick_tm(nnz, tm, sub)
    if cout <= tn:
        tn = cout                           # full-extent N block
    # Reduction axis must never read garbage: full-extent K, or zero-pad K only.
    if cin <= tk:
        tk = cin
        kdim = cin
    else:
        kdim = _round_up(cin, tk)
        if kdim != cin:
            values = jnp.pad(values, ((0, 0), (0, kdim - cin)))
            weight = jnp.pad(weight, ((0, 0), (0, kdim - cin)))
    nk = kdim // tk

    if nk == 1:
        kernel, scratch = _matmul_bias_kernel, []
    elif out_dtype == jnp.float32:
        kernel, scratch = _matmul_bias_acc_out_kernel, []     # no scratch, no copy pass
    else:
        kernel, scratch = (_matmul_bias_scratch_kernel,
                           [pltpu.VMEM((tm, tn), jnp.float32)])

    grid = (pl.cdiv(nnz, tm), pl.cdiv(cout, tn), nk)

    vmem_need = (2 * (tm * tk * x_item + tn * tk * w_item + tn * 4
                      + tm * tn * o_item) + tm * tn * 4)
    vmem_limit = int(min(max(2 * vmem_need, 16 << 20), 48 << 20))

    return pl.pallas_call(
        kernel,
        out_shape=jax.ShapeDtypeStruct((nnz, cout), out_dtype),
        grid=grid,
        in_specs=[
            pl.BlockSpec((tm, tk), lambda i, j, k: (i, k)),   # values tile
            pl.BlockSpec((tn, tk), lambda i, j, k: (j, k)),   # weight, untransposed
            pl.BlockSpec((1, tn), lambda i, j, k: (0, j)),    # bias tile
        ],
        out_specs=pl.BlockSpec((tm, tn), lambda i, j, k: (i, j)),
        scratch_shapes=scratch,
        compiler_params=pltpu.CompilerParams(
            dimension_semantics=("parallel", "parallel", "arbitrary"),
            vmem_limit_bytes=vmem_limit,
        ),
        cost_estimate=pl.CostEstimate(
            flops=2 * nnz * cout * kdim,
            transcendentals=0,
            bytes_accessed=(nnz * kdim * x_item
                            + pl.cdiv(nnz, tm) * kdim * cout * w_item
                            + cout * 4 + nnz * cout * o_item),
        ),
    )(values, weight, bias2d)


def linear_values(values, weight, bias, *, tm=512, tn=256, tk=512,
                  weight_vmem_budget=8 * 1024 * 1024):
    """values: [nnz, in_f], weight: [out_f, in_f], bias: [out_f] -> [nnz, out_f]."""
    nnz, cin = values.shape
    cout, cin_w = weight.shape
    assert cin == cin_w, (values.shape, weight.shape)

    # Decide the MXU input dtype explicitly: compute in the values dtype.
    if weight.dtype != values.dtype:
        weight = weight.astype(values.dtype)
    bias2d = bias.reshape(1, cout)

    w_bytes = cin * cout * jnp.dtype(weight.dtype).itemsize
    if w_bytes <= weight_vmem_budget:
        return _linear_values_resident(values, weight, bias2d, tm=tm)
    return _linear_values_tiled(values, weight, bias2d, tm=tm, tn=tn, tk=tk)


# ---------------------------- SparseMatrixLinear --------------------------- #
class SparseMatrixLinear:
    """Pallas equivalent of the PyTorch SparseMatrixLinear module."""

    def __init__(self, in_features, out_features, *, key, dtype=jnp.float32):
        kw, kb = jax.random.split(key)
        bound = 1.0 / (in_features ** 0.5)          # nn.Linear-style init
        self.weight = jax.random.uniform(kw, (out_features, in_features),
                                         dtype, -bound, bound)
        self.bias = jax.random.uniform(kb, (out_features,), dtype, -bound, bound)

    def __call__(self, matrix: SparseMatrix) -> SparseMatrix:
        values_out = linear_values(matrix.values, self.weight, self.bias)
        shape_out = (matrix.n, matrix.m, values_out.shape[1])
        return SparseMatrix(indices=matrix.indices, values=values_out,
                            shape=shape_out, indices_diag=matrix.indices_diag,
                            is_set=matrix.is_set)


# ----------------------------------- main ---------------------------------- #
if __name__ == "__main__":
    key = jax.random.PRNGKey(0)

    # --- Test 1: module forward (resident-weight fast path) -----------------
    n, m = 16, 16
    in_features, out_features = 32, 128

    rows, cols = [], []
    for i in range(n):
        for j in range(m):
            if (i + j) % 3 == 0:
                rows.append(i)
                cols.append(j)
    indices = jnp.array([rows, cols], dtype=jnp.int32)            # [2, nnz]
    nnz = indices.shape[1]
    indices_diag = jnp.array(
        [p for p in range(nnz) if rows[p] == cols[p]], dtype=jnp.int32)

    k_vals, k_lin, k2, k3 = jax.random.split(key, 4)
    values = jax.random.normal(k_vals, (nnz, in_features), dtype=jnp.float32)

    matrix = SparseMatrix(indices=indices, values=values,
                          shape=(n, m, in_features),
                          indices_diag=indices_diag, is_set=False)

    layer = SparseMatrixLinear(in_features, out_features, key=k_lin)
    out = layer(matrix)
    jax.block_until_ready(out.values)

    ref = values @ layer.weight.T + layer.bias
    assert out.values.shape == (nnz, out_features), out.values.shape
    assert out.values.dtype == values.dtype
    assert out.shape == (n, m, out_features), out.shape
    assert out.indices is matrix.indices
    assert out.indices_diag is matrix.indices_diag
    assert out.is_set == matrix.is_set
    assert jnp.allclose(out.values, ref, atol=1e-2, rtol=1e-2), "test1 mismatch"

    # --- Test 2: forced tiled path, f32, multi-K (accumulate into o_ref) ----
    ka, kb, kc = jax.random.split(k2, 3)
    v2 = jax.random.normal(ka, (nnz, 256), dtype=jnp.float32)
    w2 = jax.random.uniform(kb, (192, 256), jnp.float32, -0.0625, 0.0625)
    b2 = jax.random.uniform(kc, (192,), jnp.float32, -0.0625, 0.0625)
    o2 = linear_values(v2, w2, b2, tm=64, tn=128, tk=128, weight_vmem_budget=0)
    jax.block_until_ready(o2)
    r2 = v2 @ w2.T + b2
    assert o2.shape == (nnz, 192) and o2.dtype == jnp.float32
    assert jnp.allclose(o2, r2, atol=2e-2, rtol=2e-2), "test2 mismatch"

    # --- Test 3: forced tiled path, bf16, multi-K (f32 scratch accumulator) -
    kd, ke, kf = jax.random.split(k3, 3)
    v3 = jax.random.normal(kd, (nnz, 256), dtype=jnp.float32).astype(jnp.bfloat16)
    w3 = jax.random.uniform(ke, (128, 256), jnp.float32,
                            -0.0625, 0.0625).astype(jnp.bfloat16)
    b3 = jax.random.uniform(kf, (128,), jnp.float32,
                            -0.0625, 0.0625).astype(jnp.bfloat16)
    o3 = linear_values(v3, w3, b3, tm=64, tn=128, tk=128, weight_vmem_budget=0)
    jax.block_until_ready(o3)
    r3 = (v3.astype(jnp.float32) @ w3.astype(jnp.float32).T
          + b3.astype(jnp.float32)).astype(jnp.bfloat16)
    assert o3.shape == (nnz, 128) and o3.dtype == jnp.bfloat16
    assert jnp.allclose(o3.astype(jnp.float32), r3.astype(jnp.float32),
                        atol=5e-2, rtol=5e-2), "test3 mismatch"

    print("KERNEL_OK")
</pallas_src>

<mosaic_0001>
module attributes {stable_mosaic.version = 11 : i64} {
  func.func @_matmul_bias_kernel(%arg0: i32, %arg1: memref<48x32xf32, #tpu.memory_space<vmem>>, %arg2: memref<128x32xf32, #tpu.memory_space<vmem>>, %arg3: memref<1x128xf32, #tpu.memory_space<vmem>>, %arg4: memref<48x128xf32, #tpu.memory_space<vmem>>) attributes {dimension_semantics = [#tpu.dimension_semantics<parallel>], iteration_bounds = array<i64: 2>, scalar_prefetch = 0 : i64, scratch_operands = 0 : i64, tpu.core_type = #tpu.core_type<tc>, window_params = [{transform_indices = @transform_0, window_bounds = array<i64: 48, 32>}, {pipeline_mode = #tpu.pipeline_mode<synchronous>, transform_indices = @transform_1, window_bounds = array<i64: 128, 32>}, {pipeline_mode = #tpu.pipeline_mode<synchronous>, transform_indices = @transform_2, window_bounds = array<i64: 1, 128>}, {transform_indices = @transform_3, window_bounds = array<i64: 48, 128>}]} {
    %c0 = arith.constant 0 : index
    %c0_0 = arith.constant 0 : index
    %0 = vector.load %arg1[%c0, %c0_0] : memref<48x32xf32, #tpu.memory_space<vmem>>, vector<48x32xf32>
    %c0_1 = arith.constant 0 : index
    %c0_2 = arith.constant 0 : index
    %1 = vector.load %arg2[%c0_1, %c0_2] : memref<128x32xf32, #tpu.memory_space<vmem>>, vector<128x32xf32>
    %cst = arith.constant dense<0.000000e+00> : vector<48x128xf32>
    %2 = tpu.matmul %0, %1, %cst {dimension_numbers = #tpu.dot_dimension_numbers<[1], [1], [0], [0], [0, 0, 1, 0], [], []>} : vector<48x32xf32>, vector<128x32xf32>, vector<48x128xf32> -> vector<48x128xf32>
    %c0_3 = arith.constant 0 : index
    %c0_4 = arith.constant 0 : index
    %3 = vector.load %arg3[%c0_3, %c0_4] : memref<1x128xf32, #tpu.memory_space<vmem>>, vector<1x128xf32>
    %4 = vector.broadcast %3 : vector<1x128xf32> to vector<48x128xf32>
    %5 = arith.addf %2, %4 : vector<48x128xf32>
    %c0_5 = arith.constant 0 : index
    %c0_6 = arith.constant 0 : index
    %6 = vector.load %arg4[%c0_5, %c0_6] : memref<48x128xf32, #tpu.memory_space<vmem>>, vector<48x128xf32>
    tpu.vector_store %arg4[%c0_5, %c0_6], %5 {strides = array<i32>} : memref<48x128xf32, #tpu.memory_space<vmem>>, vector<48x128xf32>,
    return
  }
  func.func @transform_0(%arg0: i32) -> (i32, i32) {
    %c0_i32 = arith.constant 0 : i32
    %c0_i32_0 = arith.constant 0 : i32
    return %arg0, %c0_i32 : i32, i32
  }
  func.func @transform_1(%arg0: i32) -> (i32, i32) {
    %c0_i32 = arith.constant 0 : i32
    %c0_i32_0 = arith.constant 0 : i32
    %c0_i32_1 = arith.constant 0 : i32
    return %c0_i32, %c0_i32_0 : i32, i32
  }
  func.func @transform_2(%arg0: i32) -> (i32, i32) {
    %c0_i32 = arith.constant 0 : i32
    %c0_i32_0 = arith.constant 0 : i32
    %c0_i32_1 = arith.constant 0 : i32
    return %c0_i32, %c0_i32_0 : i32, i32
  }
  func.func @transform_3(%arg0: i32) -> (i32, i32) {
    %c0_i32 = arith.constant 0 : i32
    %c0_i32_0 = arith.constant 0 : i32
    return %arg0, %c0_i32 : i32, i32
  }
}

</mosaic_0001>

<llo_original>
// kernel: tpu_custom_call.1
$region0: #{tpu_custom_call.1}
  #allocation0 [shape = 'u32[]', space=smem, size = 0x4, offset = 0x4, fixed_abs, tag = 'smem constant byte address 0x4 - core index']
  #allocation1 [shape = 'u32[144,128]{1,0:T(1,128)}', space=vmem, size = 0x12000, scoped, tag = 'internal scratch']
  %s0 = inlined_call_operand.vmem [shape: f32[86,32], index: 0, kind: input, shape index: {}]
  %s1 = inlined_call_operand.vmem [shape: f32[128,32], index: 1, kind: input, shape index: {}]
  %s2 = inlined_call_operand.vmem [shape: f32[1,128], index: 2, kind: input, shape index: {}]
  %s3 = inlined_call_operand.hbm [shape: f32[86,128], index: 3, kind: output, shape index: {}]
  %s4 = sld [smem:[#allocation0]]
  $region45: #{tpu_custom_call.1} parent=0
    _
  %s6 = ssub.s32 1, %s4
  %s7 = scalar_select 0, %s6, %s4
  $region1: #{tpu_custom_call.1} parent=0
    #allocation2 [shape = 'u8[49152]{0}', space=vmem, size = 0xc000, scoped, tag = 'output window, operand 0']
    #allocation3 [shape = 's32[2]{0}', space=sflag, size = 0x8, scoped, tag = 'scoped memory for tpu_custom_call.1']
    %8 = vsyncpa [#allocation3], 0
    %s9 = scalar_lea.sflag [#allocation3], 1
    %10 = vsyncpa %s9, 0
    loop: start=0, step=1, limit=4
    $region2: #{tpu_custom_call.1} parent=1 // loop_pre_header
      _
    $region3: #{tpu_custom_call.1} parent=1 // loop_header
      %s12 = sphi 0, %s16
      %p13 = scmp.ge.s32.totalorder %s12, 4
      %s22 = sphi 0, %s24
      %s25 = sphi 0, %s22
      %s26 = sphi 0, %s25
      %s42 = sphi 0, %s26
      %s46 = sphi 0, %s46
      %s48 = sphi 0, %s46
      %s49 = sphi 0, %s48
      %s63 = sphi 0, %s49
      %s67 = sphi 0, %s67
      %s69 = sphi 0, %s67
      %s70 = sphi 0, %s69
      %s84 = sphi 0, %s70
      %s90 = sphi 0, %s92
      %s93 = sphi 0, %s90
      %s94 = sphi 0, %s93
      %s110 = sphi 0, %s94
    $region4: #{tpu_custom_call.1} parent=1 // loop_header_branch
      %15 = sbr.rel (%p13) target = $region8
    $region5: #{tpu_custom_call.1} parent=1 // loop_body
      %s17 = ssub.s32 %s12, 1
      %s18 = ssub.s32 %s12, 2
      %s19 = sadd.s32 %s12, 1
      %s20 = ssub.s32 %s12, %s19
      %p21 = scmp.eq.s32.totalorder %s20, 0
      %s23 = sadd.s32 %s22, 1
      %s24 = scalar_select %p21, %s22, %s23
      %p27 = pneg %p21
      %p28 = scmp.eq.s32.totalorder %s12, 1
      %p29 = por %p27, %p28
      %p30 = scmp.ne.s32.totalorder %s22, %s25
      %p31 = scmp.eq.s32.totalorder %s12, 0
      %p32 = por %p30, %p31
      %p33 = scmp.ne.s32.totalorder %s22, %s25
      %p34 = scmp.eq.s32.totalorder %s17, 1
      %p35 = por %p33, %p34
      %p36 = scmp.ne.s32.totalorder %s25, %s26
      %p37 = scmp.eq.s32.totalorder %s17, 0
      %p38 = por %p36, %p37
      %p39 = scmp.ne.s32.totalorder %s25, %s26
      %p40 = scmp.eq.s32.totalorder %s18, 1
      %p41 = por %p39, %p40
      %p43 = scmp.ne.s32.totalorder %s26, %s42
      %p44 = scmp.eq.s32.totalorder %s18, 0
      %p45 = por %p43, %p44
      %s47 = sadd.s32 %s46, 1
      %p50 = scmp.eq.s32.totalorder %s12, 1
      %p51 = scmp.ne.s32.totalorder %s46, %s48
      %p52 = scmp.eq.s32.totalorder %s12, 0
      %p53 = por %p51, %p52
      %p54 = scmp.ne.s32.totalorder %s46, %s48
      %p55 = scmp.eq.s32.totalorder %s17, 1
      %p56 = por %p54, %p55
      %p57 = scmp.ne.s32.totalorder %s48, %s49
      %p58 = scmp.eq.s32.totalorder %s17, 0
      %p59 = por %p57, %p58
      %p60 = scmp.ne.s32.totalorder %s48, %s49
      %p61 = scmp.eq.s32.totalorder %s18, 1
      %p62 = por %p60, %p61
      %p64 = scmp.ne.s32.totalorder %s49, %s63
      %p65 = scmp.eq.s32.totalorder %s18, 0
      %p66 = por %p64, %p65
      %s68 = sadd.s32 %s67, 1
      %p71 = scmp.eq.s32.totalorder %s12, 1
      %p72 = scmp.ne.s32.totalorder %s67, %s69
      %p73 = scmp.eq.s32.totalorder %s12, 0
      %p74 = por %p72, %p73
      %p75 = scmp.ne.s32.totalorder %s67, %s69
      %p76 = scmp.eq.s32.totalorder %s17, 1
      %p77 = por %p75, %p76
      %p78 = scmp.ne.s32.totalorder %s69, %s70
      %p79 = scmp.eq.s32.totalorder %s17, 0
      %p80 = por %p78, %p79
      %p81 = scmp.ne.s32.totalorder %s69, %s70
      %p82 = scmp.eq.s32.totalorder %s18, 1
      %p83 = por %p81, %p82
      %p85 = scmp.ne.s32.totalorder %s70, %s84
      %p86 = scmp.eq.s32.totalorder %s18, 0
      %p87 = por %p85, %p86
      %s88 = ssub.s32 %s12, %s19
      %p89 = scmp.eq.s32.totalorder %s88, 0
      %s91 = sadd.s32 %s90, 1
      %s92 = scalar_select %p89, %s90, %s91
      %p95 = pneg %p89
      %p96 = scmp.eq.s32.totalorder %s12, 1
      %p97 = por %p95, %p96
      %p98 = scmp.ne.s32.totalorder %s90, %s93
      %p99 = scmp.eq.s32.totalorder %s12, 0
      %p100 = por %p98, %p99
      %p101 = scmp.ne.s32.totalorder %s90, %s93
      %p102 = scmp.eq.s32.totalorder %s17, 1
      %p103 = por %p101, %p102
      %p104 = scmp.ne.s32.totalorder %s93, %s94
      %p105 = scmp.eq.s32.totalorder %s17, 0
      %p106 = por %p104, %p105
      %p107 = scmp.ne.s32.totalorder %s93, %s94
      %p108 = scmp.eq.s32.totalorder %s18, 1
      %p109 = por %p107, %p108
      %p111 = scmp.ne.s32.totalorder %s94, %s110
      %p112 = scmp.eq.s32.totalorder %s18, 0
      %p113 = por %p111, %p112
      %p114 = scmp.le.s32.totalorder 1, %s12
      %p115 = scmp.lt.s32.totalorder %s12, 3
      %p116 = pnand %p114, %p115
      %p117 = pneg %p116
      // Predicated region
      $region9: #{tpu_custom_call.1} parent=5 // pred_check
        _
      $region10: #{tpu_custom_call.1} parent=5 // pred_check_branch
        %119 = sbr.rel (%p116) target = $region12
      $region11: #{tpu_custom_call.1} parent=5 // pred_region
        %s120 = ssub.s32 %s12, 1
        // Predicated region
        $region13: #{tpu_custom_call.1} parent=11 // pred_check
          %p121 = pneg %p59
        $region14: #{tpu_custom_call.1} parent=11 // pred_check_branch
          %123 = sbr.rel (%p121) target = $region16
        $region15: #{tpu_custom_call.1} parent=11 // pred_region
          _
        $region16: #{tpu_custom_call.1} parent=11 // pred_fallthru
          _
        // Predicated region
        $region17: #{tpu_custom_call.1} parent=11 // pred_check
          %p124 = pneg %p80
        $region18: #{tpu_custom_call.1} parent=11 // pred_check_branch
          %126 = sbr.rel (%p124) target = $region20
        $region19: #{tpu_custom_call.1} parent=11 // pred_region
          _
        $region20: #{tpu_custom_call.1} parent=11 // pred_fallthru
          _
      $region12: #{tpu_custom_call.1} parent=5 // pred_fallthru
        _
      %p127 = scmp.lt.s32.totalorder %s12, 2
      // Predicated region
      $region21: #{tpu_custom_call.1} parent=5 // pred_check
        %p128 = pneg %p127
      $region22: #{tpu_custom_call.1} parent=5 // pred_check_branch
        %130 = sbr.rel (%p128) target = $region24
      $region23: #{tpu_custom_call.1} parent=5 // pred_region
        // Predicated region
        $region25: #{tpu_custom_call.1} parent=23 // pred_check
          %p131 = pneg %p32
        $region26: #{tpu_custom_call.1} parent=23 // pred_check_branch
          %133 = sbr.rel (%p131) target = $region28
        $region27: #{tpu_custom_call.1} parent=23 // pred_region
          %s134 = smul.u32 6, %s12
          %s135 = ssub.s32 11, %s134
          %p136 = scmp.lt.s32.totalorder %s135, 6
          %s137 = scalar_select %p136, %s135, 6
          %s138 = smul.u32 128, %s137
          %p139 = scmp.lt.s32.totalorder %s134, 10
          %s140 = scalar_select %p139, %s134, 10
          %s141 = smul.addr %s140, 8
          %s142 = scalar_lea.vmem %s0, %s141
          %s143 = smul.u32 6, %s12
          %s144 = ssub.s32 11, %s143
          %p145 = scmp.lt.s32.totalorder %s144, 6
          %s146 = scalar_select %p145, %s144, 6
          %s147 = smul.u32 128, %s146
        $region28: #{tpu_custom_call.1} parent=23 // pred_fallthru
          _
      $region24: #{tpu_custom_call.1} parent=5 // pred_fallthru
        _
      %p148 = scmp.le.s32.totalorder 1, %s12
      %p149 = scmp.lt.s32.totalorder %s12, 3
      %p150 = pnand %p148, %p149
      %p151 = pneg %p150
      // Predicated region
      $region29: #{tpu_custom_call.1} parent=5 // pred_check
        _
      $region30: #{tpu_custom_call.1} parent=5 // pred_check_branch
        %153 = sbr.rel (%p150) target = $region32
      $region31: #{tpu_custom_call.1} parent=5 // pred_region
        %s154 = ssub.s32 %s12, 1
        %s155 = smul.u32 6, %s17
        %s156 = ssub.s32 11, %s155
        %p157 = scmp.lt.s32.totalorder %s156, 6
        %s158 = scalar_select %p157, %s156, 6
        %s159 = smul.u32 128, %s158
        %p160 = scmp.lt.s32.totalorder %s155, 10
        %s161 = scalar_select %p160, %s155, 10
        %s162 = smul.addr %s161, 8
        %s163 = scalar_lea.vmem %s0, %s162
        %p164 = pneg %p38
        %p165 = pneg %p35
        %p166 = pneg %p59
        %p167 = pneg %p56
        %p168 = pneg %p80
        %p169 = pneg %p77
        %p170 = pneg %p106
        %p171 = pneg %p103
        %s172 = sand.u32 %s93, 1
        %s173 = scalar_lea.sflag [#allocation3], %s172
        %s174 = sand.u32 %s93, 1
        %s175 = smul.addr %s174, 48
        %s176 = scalar_lea.vmem [#allocation2], %s175
        %s177 = smul.u32 6, %s17
        %s178 = ssub.s32 11, %s177
        %p179 = scmp.lt.s32.totalorder %s178, 6
        %s180 = scalar_select %p179, %s178, 6
        %s181 = smul.u32 128, %s180
        %p182 = scmp.lt.s32.totalorder %s177, 10
        %s183 = scalar_select %p182, %s177, 10
        %s184 = smul.addr %s183, 8
        %s185 = scalar_lea.vmem %s0, %s184
        %s186 = smul.u32 6, %s17
        %s187 = ssub.s32 11, %s186
        %p188 = scmp.lt.s32.totalorder %s187, 6
        %s189 = scalar_select %p188, %s187, 6
        %s190 = smul.u32 128, %s189
        %s191 = smul.u32 6, %s17
        %s192 = ssub.s32 11, %s191
        %p193 = scmp.lt.s32.totalorder %s192, 6
        %s194 = scalar_select %p193, %s192, 6
        %s195 = smul.u32 128, %s194
        %v196 = vld [vmem:[%s185] sm:$0xff]
        %v197 = vld [vmem:[%s185 + $0x8] sm:$0xff]
        %v198 = vld [vmem:[%s185 + $0x10] sm:$0xff]
        %v199 = vld [vmem:[%s185 + $0x18] sm:$0xff]
        %v200 = vld [vmem:[%s185 + $0x20] sm:$0xff]
        %v201 = vld [vmem:[%s185 + $0x28] sm:$0xff]
        %v202 = vld [vmem:[%s1] sm:$0xff]
        %v203 = vld [vmem:[%s1 + $0x8] sm:$0xff]
        %v204 = vld [vmem:[%s1 + $0x10] sm:$0xff]
        %v205 = vld [vmem:[%s1 + $0x18] sm:$0xff]
        %v206 = vld [vmem:[%s1 + $0x20] sm:$0xff]
        %v207 = vld [vmem:[%s1 + $0x28] sm:$0xff]
        %v208 = vld [vmem:[%s1 + $0x30] sm:$0xff]
        %v209 = vld [vmem:[%s1 + $0x38] sm:$0xff]
        %v210 = vld [vmem:[%s1 + $0x40] sm:$0xff]
        %v211 = vld [vmem:[%s1 + $0x48] sm:$0xff]
        %v212 = vld [vmem:[%s1 + $0x50] sm:$0xff]
        %v213 = vld [vmem:[%s1 + $0x58] sm:$0xff]
        %v214 = vld [vmem:[%s1 + $0x60] sm:$0xff]
        %v215 = vld [vmem:[%s1 + $0x68] sm:$0xff]
        %v216 = vld [vmem:[%s1 + $0x70] sm:$0xff]
        %v217 = vld [vmem:[%s1 + $0x78] sm:$0xff]
        %v218 = vld [vmem:[%s2] sm:$0x1]
        %v220 = vlaneseq
        %v221 = vshrl.u32 %v220, 7
        %v222 = vsub.s32 0, %v221
        %v223 = vrot.slane %v218, %v222
        %vm225 = vcmask 261120
        %v227 = vsel %vm225, %v196, 0
        %v230 = vsel %vm225, %v197, 0
        %v233 = vsel %vm225, %v198, 0
        %v236 = vsel %vm225, %v199, 0
        %v239 = vsel %vm225, %v200, 0
        %v242 = vsel %vm225, %v201, 0
        %v245 = vsel %vm225, %v202, 0
        %v248 = vsel %vm225, %v203, 0
        %v251 = vsel %vm225, %v204, 0
        %v254 = vsel %vm225, %v205, 0
        %v257 = vsel %vm225, %v206, 0
        %v260 = vsel %vm225, %v207, 0
        %v263 = vsel %vm225, %v208, 0
        %v266 = vsel %vm225, %v209, 0
        %v269 = vsel %vm225, %v210, 0
        %v272 = vsel %vm225, %v211, 0
        %v275 = vsel %vm225, %v212, 0
        %v278 = vsel %vm225, %v213, 0
        %v281 = vsel %vm225, %v214, 0
        %v284 = vsel %vm225, %v215, 0
        %v287 = vsel %vm225, %v216, 0
        %v290 = vsel %vm225, %v217, 0
        %292 = vmatprep.subr.mxu0 0.0
        %293 = vmatpush1.xpose.msra.mxu0 %v245
        %294 = vmatprep.subr.mxu0 0.0
        %295 = vmatpush1.xpose.msra.mxu0 %v248
        %296 = vmatprep.subr.mxu0 0.0
        %297 = vmatpush1.xpose.msra.mxu0 %v251
        %298 = vmatprep.subr.mxu0 0.0
        %299 = vmatpush1.xpose.msra.mxu0 %v254
        %300 = vmatprep.subr.mxu0 0.0
        %301 = vmatpush1.xpose.msra.mxu0 %v257
        %302 = vmatprep.subr.mxu0 0.0
        %303 = vmatpush1.xpose.msra.mxu0 %v260
        %304 = vmatprep.subr.mxu0 0.0
        %305 = vmatpush1.xpose.msra.mxu0 %v263
        %306 = vmatprep.subr.mxu0 0.0
        %307 = vmatpush1.xpose.msra.mxu0 %v266
        %308 = vmatprep.subr.mxu0 0.0
        %309 = vmatpush1.xpose.msra.mxu0 %v269
        %310 = vmatprep.subr.mxu0 0.0
        %311 = vmatpush1.xpose.msra.mxu0 %v272
        %312 = vmatprep.subr.mxu0 0.0
        %313 = vmatpush1.xpose.msra.mxu0 %v275
        %314 = vmatprep.subr.mxu0 0.0
        %315 = vmatpush1.xpose.msra.mxu0 %v278
        %316 = vmatprep.subr.mxu0 0.0
        %317 = vmatpush1.xpose.msra.mxu0 %v281
        %318 = vmatprep.subr.mxu0 0.0
        %319 = vmatpush1.xpose.msra.mxu0 %v284
        %320 = vmatprep.subr.mxu0 0.0
        %321 = vmatpush1.xpose.msra.mxu0 %v287
        %322 = vmatprep.subr.mxu0 0.0
        %323 = vmatpush1.xpose.msra.mxu0 %v290
        %324 = vmatprep.subr.mxu0 0.0
        %325 = vmatpush1.xpose.msra.mxu0 0.0
        %326 = vmatprep.subr.mxu0 0.0
        %327 = vmatpush1.xpose.msra.mxu0 0.0
        %328 = vmatprep.subr.mxu0 0.0
        %329 = vmatpush1.xpose.msra.mxu0 0.0
        %330 = vmatprep.subr.mxu0 0.0
        %331 = vmatpush1.xpose.msra.mxu0 0.0
        %332 = vmatprep.subr.mxu0 0.0
        %333 = vmatpush1.xpose.msra.mxu0 0.0
        %334 = vmatprep.subr.mxu0 0.0
        %335 = vmatpush1.xpose.msra.mxu0 0.0
        %336 = vmatprep.subr.mxu0 0.0
        %337 = vmatpush1.xpose.msra.mxu0 0.0
        %338 = vmatprep.subr.mxu0 0.0
        %339 = vmatpush1.xpose.msra.mxu0 0.0
        %340 = vmatprep.subr.mxu0 0.0
        %341 = vmatpush1.xpose.msra.mxu0 0.0
        %342 = vmatprep.subr.mxu0 0.0
        %343 = vmatpush1.xpose.msra.mxu0 0.0
        %344 = vmatprep.subr.mxu0 0.0
        %345 = vmatpush1.xpose.msra.mxu0 0.0
        %346 = vmatprep.subr.mxu0 0.0
        %347 = vmatpush1.xpose.msra.mxu0 0.0
        %348 = vmatprep.subr.mxu0 0.0
        %349 = vmatpush1.xpose.msra.mxu0 0.0
        %350 = vmatprep.subr.mxu0 0.0
        %351 = vmatpush1.xpose.msra.mxu0 0.0
        %352 = vmatprep.subr.mxu0 0.0
        %353 = vmatpush1.xpose.msra.mxu0 0.0
        %354 = vmatprep.subr.mxu0 0.0
        %355 = vmatpush1.xpose.msra.mxu0 0.0
        %356 = vmatprep.mubr.f32.mxu0 0.0
        %357 = vmatmul.mubr.f32.gmra.mrb[0].mxu0 %v227
        %v358 = vpop.f32.mrb[0].mxu0
        %v359 = vadd.f32 %v223, %v358
        %v360 = vpop.f32.mrb[0].mxu0
        %361 = vmatprep.mubr.f32.mxu0 0.0
        %362 = vmatmul.mubr.f32.gmra.mrb[0].mxu0 %v230
        %v363 = vpop.f32.mrb[0].mxu0
        %v364 = vadd.f32 %v223, %v363
        %v365 = vpop.f32.mrb[0].mxu0
        %366 = vmatprep.mubr.f32.mxu0 0.0
        %367 = vmatmul.mubr.f32.gmra.mrb[0].mxu0 %v233
        %v368 = vpop.f32.mrb[0].mxu0
        %v369 = vadd.f32 %v223, %v368
        %v370 = vpop.f32.mrb[0].mxu0
        %371 = vmatprep.mubr.f32.mxu0 0.0
        %372 = vmatmul.mubr.f32.gmra.mrb[0].mxu0 %v236
        %v373 = vpop.f32.mrb[0].mxu0
        %v374 = vadd.f32 %v223, %v373
        %v375 = vpop.f32.mrb[0].mxu0
        %376 = vmatprep.mubr.f32.mxu0 0.0
        %377 = vmatmul.mubr.f32.gmra.mrb[0].mxu0 %v239
        %v378 = vpop.f32.mrb[0].mxu0
        %v379 = vadd.f32 %v223, %v378
        %v380 = vpop.f32.mrb[0].mxu0
        %381 = vmatprep.mubr.f32.mxu0 0.0
        %382 = vmatmul.mubr.f32.gmra.mrb[0].mxu0 %v242
        %v383 = vpop.f32.mrb[0].mxu0
        %v384 = vadd.f32 %v223, %v383
        %v385 = vpop.f32.mrb[0].mxu0
        %386 = vdwg.mxu0
        %387 = vst [vmem:[%s176] sm:$0xff] %v359
        %388 = vst [vmem:[%s176 + $0x8] sm:$0xff] %v364
        %389 = vst [vmem:[%s176 + $0x10] sm:$0xff] %v369
        %390 = vst [vmem:[%s176 + $0x18] sm:$0xff] %v374
        %391 = vst [vmem:[%s176 + $0x20] sm:$0xff] %v379
        %392 = vst [vmem:[%s176 + $0x28] sm:$0xff] %v384
        %s393 = sand.u32 %s93, 1
        %s394 = scalar_lea.sflag [#allocation3], %s393
        %s395 = sand.u32 %s93, 1
        %s396 = smul.addr %s395, 48
        %s397 = scalar_lea.vmem [#allocation2], %s396
        // Predicated region
        $region33: #{tpu_custom_call.1} parent=31 // pred_check
          %p398 = pneg %p103
        $region34: #{tpu_custom_call.1} parent=31 // pred_check_branch
          %400 = sbr.rel (%p398) target = $region36
        $region35: #{tpu_custom_call.1} parent=31 // pred_region
          %s401 = smul.u32 6, %s17
          %s402 = ssub.s32 11, %s401
          %p403 = scmp.lt.s32.totalorder %s402, 6
          %s404 = scalar_select %p403, %s402, 6
          %s405 = smul.u32 128, %s404
          %s407 = ssub.s32 768, %s405
          %408 = vsyncadd %s394, %s407
          %p409 = scmp.ne.s32.totalorder 0, %s405
          %s410 = smul.addr %s401, 128
          %s411 = scalar_lea.hbm %s3, %s410
          %s412 = smul.u32 8, %s404
          %s413 = sshll.u32 %s397, 4
          %s414 = int_to_ptr.vmem [resolvable:$true] %s413
          %s415 = sshll.u32 %s412, 4
          %419 = dma.vmem_to_hbm [thread:$0]  (%p409), %s414, %s415, %s411, %s394, 128, 128, 8
        $region36: #{tpu_custom_call.1} parent=31 // pred_fallthru
          _
      $region32: #{tpu_custom_call.1} parent=5 // pred_fallthru
        _
      %p420 = scmp.le.s32.totalorder 2, %s12
      // Predicated region
      $region37: #{tpu_custom_call.1} parent=5 // pred_check
        %p421 = pneg %p420
      $region38: #{tpu_custom_call.1} parent=5 // pred_check_branch
        %423 = sbr.rel (%p421) target = $region40
      $region39: #{tpu_custom_call.1} parent=5 // pred_region
        %s424 = ssub.s32 %s12, 2
        // Predicated region
        $region41: #{tpu_custom_call.1} parent=39 // pred_check
          %p425 = pneg %p109
        $region42: #{tpu_custom_call.1} parent=39 // pred_check_branch
          %427 = sbr.rel (%p425) target = $region44
        $region43: #{tpu_custom_call.1} parent=39 // pred_region
          %s428 = sand.u32 %s94, 1
          %s429 = scalar_lea.sflag [#allocation3], %s428
          %s430 = sand.u32 %s94, 1
          %s431 = smul.addr %s430, 48
          %s432 = scalar_lea.vmem [#allocation2], %s431
          %433 = dma.done %s429, 768
        $region44: #{tpu_custom_call.1} parent=39 // pred_fallthru
          _
      $region40: #{tpu_custom_call.1} parent=5 // pred_fallthru
        _
    $region6: #{tpu_custom_call.1} parent=1 // loop_footer
      %s16 = sadd.s32 1, %s12
    $region7: #{tpu_custom_call.1} parent=1 // loop_footer_branch
      %11 = sbr.rel target = $region3
    $region8: #{tpu_custom_call.1} parent=1 // loop_exit
      _
    %434 = vsyncpa [#allocation3], 1
    %s435 = scalar_lea.sflag [#allocation3], 1
    %436 = vsyncpa %s435, 1

</llo_original>
